<compile_context>
chip_gen: v7x
topology: tpu7x:2x2x1
jax: 0.10.0
libtpu: 0.0.40
codegen_flags: <defaults>
</compile_context>

<pallas_src>
import functools

import jax
import jax.numpy as jnp
from jax.experimental import pallas as pl
from jax.experimental.pallas import tpu as pltpu


def _round_up(n, m):
    return ((n + m - 1) // m) * m


def _pick_chunk(tile_n, target=512):
    """Largest column-chunk <= target (multiple of 128) that divides tile_n."""
    if tile_n <= target:
        return tile_n
    for cand in (512, 384, 256, 128):
        if tile_n % cand == 0:
            return cand
    return 128


def _mlp_kernel(n_layers, chunk, *refs):
    """refs = (x_ref, t_ref, w0, b0, w1, b1, ..., w_{L-1}, b_{L-1}, out_ref).

    Batch-on-lanes layout:
      x_ref, t_ref : (1, tile_n)    -- one feature row each, batch on lanes
      w_i          : (out_i, in_i)  -- native PyTorch Linear layout
      b_i          : (out_i, 1)
      out_ref      : (out_dim, tile_n)
    """
    x_ref, t_ref = refs[0], refs[1]
    out_ref = refs[-1]
    param_refs = refs[2:-1]
    assert len(param_refs) == 2 * n_layers

    # Params are tiny and VMEM-resident (constant index_map); load and slice
    # them ONCE per grid step, hoisted out of the chunk loop (JAX does not CSE
    # broadcasts, so re-slicing per chunk would re-materialize them).
    w0 = param_refs[0][...]          # (h0, 2)
    b0 = param_refs[1][...]          # (h0, 1)
    w0x = w0[:, 0:1]                 # (h0, 1)
    w0t = w0[:, 1:2]                 # (h0, 1)
    ws = [param_refs[2 * i][...] for i in range(1, n_layers)]
    bs = [param_refs[2 * i + 1][...] for i in range(1, n_layers)]

    tile_n = x_ref.shape[1]
    n_chunks = tile_n // chunk

    # Process the batch tile in `chunk`-wide column sub-blocks, running ALL
    # layers per sub-block: per-layer intermediates stay at (h, chunk) f32
    # (~64 KiB at chunk=512) instead of (h, tile_n), so activations stay near
    # the vreg file (no VMEM spill/reload between layers) and EUP tanh of one
    # chunk can overlap the MXU matmuls of its neighbors.  Static slices ->
    # zero-cost, lane-aligned addressing.
    for c in range(n_chunks):
        lo, hi = c * chunk, (c + 1) * chunk
        xc = x_ref[:, lo:hi]         # (1, chunk)
        tc = t_ref[:, lo:hi]         # (1, chunk)

        # Layer 0 (K = 2): far too narrow for the MXU -> VPU broadcast-FMAs.
        u = b0 + w0x * xc + w0t * tc                     # (h0, chunk), f32
        if n_layers > 1:
            u = jnp.tanh(u)

        # Remaining layers: MXU matmuls with f32 accumulation.  (The 32-wide
        # hidden layers pad to a full MXU tile, so utilization is low; a
        # 128-wide model would be nearly free MXU time.  The final (2 x 32)
        # layer could alternatively run as VPU broadcast-FMA reductions to
        # shave ~1/3 of the MXU pushes -- kept on the MXU here for clarity.)
        for i in range(n_layers - 1):
            w, b = ws[i], bs[i]
            u = jnp.dot(w, u.astype(w.dtype),
                        preferred_element_type=jnp.float32) + b
            if i < n_layers - 2:
                u = jnp.tanh(u)

        out_ref[:, lo:hi] = u.astype(out_ref.dtype)


def init_params(key, layers):
    """Xavier-normal weights in PyTorch (out, in) layout, zero biases."""
    params = []
    for i in range(len(layers) - 1):
        fan_in, fan_out = layers[i], layers[i + 1]
        key, sub = jax.random.split(key)
        std = (2.0 / (fan_in + fan_out)) ** 0.5
        w = std * jax.random.normal(sub, (fan_out, fan_in), dtype=jnp.float32)
        b = jnp.zeros((fan_out,), dtype=jnp.float32)
        params.append((w, b))
    return params


def schrodinger_pinn_forward(x, t, params, tile_n=8192, mxu_dtype=jnp.float32):
    """x, t: (N, 1) float32.  Returns (N, layers[-1]) float32.

    mxu_dtype controls the dtype of hidden-layer weights/activations fed to
    the MXU (accumulation is always f32).  bf16 is ~2-3x faster on the MXU but
    drops below the 1e-4 reference tolerance and should stay f32 if this
    forward later feeds PINN derivative (tangent) computations.
    """
    N = x.shape[0]
    n_layers = len(params)
    in_dim = params[0][0].shape[1]
    out_dim = params[-1][0].shape[0]
    assert in_dim == 2, "SchrodingerPINN1D takes (x, t): first layer must have in_dim=2"

    # ---- batch tile selection -------------------------------------------
    # Lane-dense (multiple of 128) and big enough to amortize the ~0.35 us
    # per-grid-step overhead; the in-kernel chunking keeps the intermediate
    # footprint independent of tile_n, so 8K-32K tiles only use a few hundred
    # KiB of VMEM.  Cap at ~N/2 so the grid has >=2 steps and the "parallel"
    # axis can shard across both TensorCores on v7x (no cost on v5e/v6e).
    tile_n = max(128, _round_up(int(tile_n), 128))
    two_step_cap = max(128, _round_up(-(-N // 2), 128))
    tile_n = min(tile_n, two_step_cap)
    n_pad = _round_up(N, tile_n)
    chunk = _pick_chunk(tile_n)

    # ---- layout plumbing: no concat / no materialized transpose ----------
    # (N, 1) -> (1, N) is a free reshape; the [x, t] concat is absorbed into
    # the kernel's first layer (two feature rows).  The pad copy only happens
    # when N is not already tile-aligned.
    xr = jnp.reshape(x.astype(jnp.float32), (1, N))
    tr = jnp.reshape(t.astype(jnp.float32), (1, N))
    if n_pad != N:
        xr = jnp.pad(xr, ((0, 0), (0, n_pad - N)))
        tr = jnp.pad(tr, ((0, 0), (0, n_pad - N)))

    flat_args = [xr, tr]
    in_specs = [pl.BlockSpec((1, tile_n), lambda i: (0, i)),
                pl.BlockSpec((1, tile_n), lambda i: (0, i))]
    for li, (w, b) in enumerate(params):
        w_dtype = jnp.float32 if li == 0 else mxu_dtype   # layer 0 runs on VPU
        flat_args.append(w.astype(w_dtype))                  # (out, in)
        flat_args.append(b.reshape(-1, 1).astype(jnp.float32))
        # Constant index_map -> block fetched once, resident in VMEM for every
        # grid step (no per-step re-DMA).  pipeline_mode=pl.Buffered(1) would
        # also drop the unused second buffer; left at default for portability.
        in_specs.append(pl.BlockSpec(w.shape, lambda i: (0, 0)))
        in_specs.append(pl.BlockSpec((w.shape[0], 1), lambda i: (0, 0)))
    out_spec = pl.BlockSpec((out_dim, tile_n), lambda i: (0, i))

    # Advisory cost estimate for the XLA scheduler.
    flops = 2 * N * sum(int(w.shape[0]) * int(w.shape[1]) for w, _ in params)
    transcendentals = N * sum(int(w.shape[0]) for w, _ in params[:-1])
    bytes_accessed = 4 * N * (in_dim + out_dim) + sum(
        4 * (int(w.size) + int(b.size)) for w, b in params)

    kernel = functools.partial(_mlp_kernel, n_layers, chunk)
    out_t = pl.pallas_call(
        kernel,
        grid=(n_pad // tile_n,),
        in_specs=in_specs,
        out_specs=out_spec,
        out_shape=jax.ShapeDtypeStruct((out_dim, n_pad), jnp.float32),
        compiler_params=pltpu.CompilerParams(
            dimension_semantics=("parallel",)),
        cost_estimate=pl.CostEstimate(
            flops=flops,
            transcendentals=transcendentals,
            bytes_accessed=bytes_accessed),
    )(*flat_args)

    # Back to the PyTorch (N, out_dim) orientation; drop the padded tail.
    # (Callers that can consume (out_dim, N) directly may skip this .T.)
    return out_t[:, :N].T


def reference_forward(x, t, params):
    """Pure-JAX reference matching the PyTorch forward exactly."""
    u = jnp.concatenate([x, t], axis=1)
    for i, (w, b) in enumerate(params):
        u = u @ w.T + b
        if i < len(params) - 1:
            u = jnp.tanh(u)
    return u


if __name__ == "__main__":
    # Small Schrodinger PINN: (x, t) -> 3 hidden layers of 32 -> (Re psi, Im psi)
    layers = [2, 32, 32, 32, 2]
    batch = 300           # non-multiple of 128: exercises padding + 2-step grid

    key = jax.random.PRNGKey(0)
    kx, kt, kp = jax.random.split(key, 3)
    x = jax.random.uniform(kx, (batch, 1), dtype=jnp.float32,
                           minval=-5.0, maxval=5.0)
    t = jax.random.uniform(kt, (batch, 1), dtype=jnp.float32,
                           minval=0.0, maxval=1.0)

    params = init_params(kp, layers)

    # Default tile_n=8192 is auto-clamped to a lane-aligned ~N/2 tile here, so
    # the demo still runs a multi-step "parallel" grid with a padded tail.
    out = schrodinger_pinn_forward(x, t, params)
    out = jax.block_until_ready(out)

    ref = reference_forward(x, t, params)
    assert out.shape == (batch, layers[-1])
    assert jnp.allclose(out, ref, atol=1e-4, rtol=1e-4), "mismatch vs reference"

    print("KERNEL_OK")
</pallas_src>

<mosaic_0001>
module attributes {stable_mosaic.version = 11 : i64} {
  func.func @_mlp_kernel(%arg0: i32, %arg1: memref<1x256xf32, #tpu.memory_space<vmem>>, %arg2: memref<1x256xf32, #tpu.memory_space<vmem>>, %arg3: memref<32x2xf32, #tpu.memory_space<vmem>>, %arg4: memref<32x1xf32, #tpu.memory_space<vmem>>, %arg5: memref<32x32xf32, #tpu.memory_space<vmem>>, %arg6: memref<32x1xf32, #tpu.memory_space<vmem>>, %arg7: memref<32x32xf32, #tpu.memory_space<vmem>>, %arg8: memref<32x1xf32, #tpu.memory_space<vmem>>, %arg9: memref<2x32xf32, #tpu.memory_space<vmem>>, %arg10: memref<2x1xf32, #tpu.memory_space<vmem>>, %arg11: memref<2x256xf32, #tpu.memory_space<vmem>>) attributes {dimension_semantics = [#tpu.dimension_semantics<parallel>], iteration_bounds = array<i64: 2>, scalar_prefetch = 0 : i64, scratch_operands = 0 : i64, tpu.core_type = #tpu.core_type<tc>, window_params = [{transform_indices = @transform_0, window_bounds = array<i64: 1, 256>}, {transform_indices = @transform_1, window_bounds = array<i64: 1, 256>}, {pipeline_mode = #tpu.pipeline_mode<synchronous>, transform_indices = @transform_2, window_bounds = array<i64: 32, 2>}, {pipeline_mode = #tpu.pipeline_mode<synchronous>, transform_indices = @transform_3, window_bounds = array<i64: 32, 1>}, {pipeline_mode = #tpu.pipeline_mode<synchronous>, transform_indices = @transform_4, window_bounds = array<i64: 32, 32>}, {pipeline_mode = #tpu.pipeline_mode<synchronous>, transform_indices = @transform_5, window_bounds = array<i64: 32, 1>}, {pipeline_mode = #tpu.pipeline_mode<synchronous>, transform_indices = @transform_6, window_bounds = array<i64: 32, 32>}, {pipeline_mode = #tpu.pipeline_mode<synchronous>, transform_indices = @transform_7, window_bounds = array<i64: 32, 1>}, {pipeline_mode = #tpu.pipeline_mode<synchronous>, transform_indices = @transform_8, window_bounds = array<i64: 2, 32>}, {pipeline_mode = #tpu.pipeline_mode<synchronous>, transform_indices = @transform_9, window_bounds = array<i64: 2, 1>}, {transform_indices = @transform_10, window_bounds = array<i64: 2, 256>}]} {
    %c0 = arith.constant 0 : index
    %c0_0 = arith.constant 0 : index
    %0 = vector.load %arg3[%c0, %c0_0] : memref<32x2xf32, #tpu.memory_space<vmem>>, vector<32x2xf32>
    %c0_1 = arith.constant 0 : index
    %c0_2 = arith.constant 0 : index
    %1 = vector.load %arg4[%c0_1, %c0_2] : memref<32x1xf32, #tpu.memory_space<vmem>>, vector<32x1xf32>
    %2 = vector.extract_strided_slice %0 {offsets = [0, 0], sizes = [32, 1], strides = [1, 1]} : vector<32x2xf32> to vector<32x1xf32>
    %3 = vector.extract_strided_slice %0 {offsets = [0, 1], sizes = [32, 1], strides = [1, 1]} : vector<32x2xf32> to vector<32x1xf32>
    %c0_3 = arith.constant 0 : index
    %c0_4 = arith.constant 0 : index
    %4 = vector.load %arg5[%c0_3, %c0_4] : memref<32x32xf32, #tpu.memory_space<vmem>>, vector<32x32xf32>
    %c0_5 = arith.constant 0 : index
    %c0_6 = arith.constant 0 : index
    %5 = vector.load %arg7[%c0_5, %c0_6] : memref<32x32xf32, #tpu.memory_space<vmem>>, vector<32x32xf32>
    %c0_7 = arith.constant 0 : index
    %c0_8 = arith.constant 0 : index
    %6 = vector.load %arg9[%c0_7, %c0_8] : memref<2x32xf32, #tpu.memory_space<vmem>>, vector<2x32xf32>
    %c0_9 = arith.constant 0 : index
    %c0_10 = arith.constant 0 : index
    %7 = vector.load %arg6[%c0_9, %c0_10] : memref<32x1xf32, #tpu.memory_space<vmem>>, vector<32x1xf32>
    %c0_11 = arith.constant 0 : index
    %c0_12 = arith.constant 0 : index
    %8 = vector.load %arg8[%c0_11, %c0_12] : memref<32x1xf32, #tpu.memory_space<vmem>>, vector<32x1xf32>
    %c0_13 = arith.constant 0 : index
    %c0_14 = arith.constant 0 : index
    %9 = vector.load %arg10[%c0_13, %c0_14] : memref<2x1xf32, #tpu.memory_space<vmem>>, vector<2x1xf32>
    %c0_15 = arith.constant 0 : index
    %c0_16 = arith.constant 0 : index
    %10 = vector.load %arg1[%c0_15, %c0_16] : memref<1x256xf32, #tpu.memory_space<vmem>>, vector<1x256xf32>
    %c0_17 = arith.constant 0 : index
    %c0_18 = arith.constant 0 : index
    %11 = vector.load %arg2[%c0_17, %c0_18] : memref<1x256xf32, #tpu.memory_space<vmem>>, vector<1x256xf32>
    %12 = vector.broadcast %2 : vector<32x1xf32> to vector<32x256xf32>
    %13 = vector.broadcast %10 : vector<1x256xf32> to vector<32x256xf32>
    %14 = arith.mulf %12, %13 : vector<32x256xf32>
    %15 = vector.broadcast %1 : vector<32x1xf32> to vector<32x256xf32>
    %16 = arith.addf %15, %14 : vector<32x256xf32>
    %17 = vector.broadcast %3 : vector<32x1xf32> to vector<32x256xf32>
    %18 = vector.broadcast %11 : vector<1x256xf32> to vector<32x256xf32>
    %19 = arith.mulf %17, %18 : vector<32x256xf32>
    %20 = arith.addf %16, %19 : vector<32x256xf32>
    %21 = math.tanh %20 : vector<32x256xf32>
    %cst = arith.constant dense<0.000000e+00> : vector<32x256xf32>
    %22 = tpu.matmul %4, %21, %cst {dimension_numbers = #tpu.dot_dimension_numbers<[1], [0], [0], [1], [0, 0, 1, 1], [], []>} : vector<32x32xf32>, vector<32x256xf32>, vector<32x256xf32> -> vector<32x256xf32>
    %23 = vector.broadcast %7 : vector<32x1xf32> to vector<32x256xf32>
    %24 = arith.addf %22, %23 : vector<32x256xf32>
    %25 = math.tanh %24 : vector<32x256xf32>
    %cst_19 = arith.constant dense<0.000000e+00> : vector<32x256xf32>
    %26 = tpu.matmul %5, %25, %cst_19 {dimension_numbers = #tpu.dot_dimension_numbers<[1], [0], [0], [1], [0, 0, 1, 1], [], []>} : vector<32x32xf32>, vector<32x256xf32>, vector<32x256xf32> -> vector<32x256xf32>
    %27 = vector.broadcast %8 : vector<32x1xf32> to vector<32x256xf32>
    %28 = arith.addf %26, %27 : vector<32x256xf32>
    %29 = math.tanh %28 : vector<32x256xf32>
    %cst_20 = arith.constant dense<0.000000e+00> : vector<2x256xf32>
    %30 = tpu.matmul %6, %29, %cst_20 {dimension_numbers = #tpu.dot_dimension_numbers<[1], [0], [0], [1], [0, 0, 1, 1], [], []>} : vector<2x32xf32>, vector<32x256xf32>, vector<2x256xf32> -> vector<2x256xf32>
    %31 = vector.broadcast %9 : vector<2x1xf32> to vector<2x256xf32>
    %32 = arith.addf %30, %31 : vector<2x256xf32>
    %c0_21 = arith.constant 0 : index
    %c0_22 = arith.constant 0 : index
    %33 = vector.load %arg11[%c0_21, %c0_22] : memref<2x256xf32, #tpu.memory_space<vmem>>, vector<2x256xf32>
    tpu.vector_store %arg11[%c0_21, %c0_22], %32 {strides = array<i32>} : memref<2x256xf32, #tpu.memory_space<vmem>>, vector<2x256xf32>,
    return
  }
  func.func @transform_0(%arg0: i32) -> (i32, i32) {
    %c0_i32 = arith.constant 0 : i32
    %c0_i32_0 = arith.constant 0 : i32
    return %c0_i32, %arg0 : i32, i32
  }
  func.func @transform_1(%arg0: i32) -> (i32, i32) {
    %c0_i32 = arith.constant 0 : i32
    %c0_i32_0 = arith.constant 0 : i32
    return %c0_i32, %arg0 : i32, i32
  }
  func.func @transform_2(%arg0: i32) -> (i32, i32) {
    %c0_i32 = arith.constant 0 : i32
    %c0_i32_0 = arith.constant 0 : i32
    %c0_i32_1 = arith.constant 0 : i32
    return %c0_i32, %c0_i32_0 : i32, i32
  }
  func.func @transform_3(%arg0: i32) -> (i32, i32) {
    %c0_i32 = arith.constant 0 : i32
    %c0_i32_0 = arith.constant 0 : i32
    %c0_i32_1 = arith.constant 0 : i32
    return %c0_i32, %c0_i32_0 : i32, i32
  }
  func.func @transform_4(%arg0: i32) -> (i32, i32) {
    %c0_i32 = arith.constant 0 : i32
    %c0_i32_0 = arith.constant 0 : i32
    %c0_i32_1 = arith.constant 0 : i32
    return %c0_i32, %c0_i32_0 : i32, i32
  }
  func.func @transform_5(%arg0: i32) -> (i32, i32) {
    %c0_i32 = arith.constant 0 : i32
    %c0_i32_0 = arith.constant 0 : i32
    %c0_i32_1 = arith.constant 0 : i32
    return %c0_i32, %c0_i32_0 : i32, i32
  }
  func.func @transform_6(%arg0: i32) -> (i32, i32) {
    %c0_i32 = arith.constant 0 : i32
    %c0_i32_0 = arith.constant 0 : i32
    %c0_i32_1 = arith.constant 0 : i32
    return %c0_i32, %c0_i32_0 : i32, i32
  }
  func.func @transform_7(%arg0: i32) -> (i32, i32) {
    %c0_i32 = arith.constant 0 : i32
    %c0_i32_0 = arith.constant 0 : i32
    %c0_i32_1 = arith.constant 0 : i32
    return %c0_i32, %c0_i32_0 : i32, i32
  }
  func.func @transform_8(%arg0: i32) -> (i32, i32) {
    %c0_i32 = arith.constant 0 : i32
    %c0_i32_0 = arith.constant 0 : i32
    %c0_i32_1 = arith.constant 0 : i32
    return %c0_i32, %c0_i32_0 : i32, i32
  }
  func.func @transform_9(%arg0: i32) -> (i32, i32) {
    %c0_i32 = arith.constant 0 : i32
    %c0_i32_0 = arith.constant 0 : i32
    %c0_i32_1 = arith.constant 0 : i32
    return %c0_i32, %c0_i32_0 : i32, i32
  }
  func.func @transform_10(%arg0: i32) -> (i32, i32) {
    %c0_i32 = arith.constant 0 : i32
    %c0_i32_0 = arith.constant 0 : i32
    return %c0_i32, %arg0 : i32, i32
  }
}

</mosaic_0001>

<llo_original>
// kernel: tpu_custom_call.1
$region0: #{tpu_custom_call.1}
  #allocation0 [shape = 'u32[]', space=smem, size = 0x4, offset = 0x4, fixed_abs, tag = 'smem constant byte address 0x4 - core index']
  #allocation1 [shape = 'u32[144,128]{1,0:T(1,128)}', space=vmem, size = 0x12000, scoped, tag = 'internal scratch']
  %s0 = inlined_call_operand.vmem [shape: f32[1,512], index: 0, kind: input, shape index: {}]
  %s1 = inlined_call_operand.vmem [shape: f32[1,512], index: 1, kind: input, shape index: {}]
  %s2 = inlined_call_operand.vmem [shape: f32[32,2], index: 2, kind: input, shape index: {}]
  %s3 = inlined_call_operand.vmem [shape: f32[32,1], index: 3, kind: input, shape index: {}]
  %s4 = inlined_call_operand.vmem [shape: f32[32,32], index: 4, kind: input, shape index: {}]
  %s5 = inlined_call_operand.vmem [shape: f32[32,1], index: 5, kind: input, shape index: {}]
  %s6 = inlined_call_operand.vmem [shape: f32[32,32], index: 6, kind: input, shape index: {}]
  %s7 = inlined_call_operand.vmem [shape: f32[32,1], index: 7, kind: input, shape index: {}]
  %s8 = inlined_call_operand.vmem [shape: f32[2,32], index: 8, kind: input, shape index: {}]
  %s9 = inlined_call_operand.vmem [shape: f32[2,1], index: 9, kind: input, shape index: {}]
  %s10 = inlined_call_operand.hbm [shape: f32[2,512], index: 10, kind: output, shape index: {}]
  %s11 = sld [smem:[#allocation0]]
  $region73: #{tpu_custom_call.1} parent=0
    _
  %s13 = ssub.s32 1, %s11
  %s14 = scalar_select 0, %s13, %s11
  $region1: #{tpu_custom_call.1} parent=0
    #allocation2 [shape = 'u8[4096]{0}', space=vmem, size = 0x1000, scoped, tag = 'output window, operand 0']
    #allocation3 [shape = 's32[2]{0}', space=sflag, size = 0x8, scoped, tag = 'scoped memory for tpu_custom_call.1']
    %15 = vsyncpa [#allocation3], 0
    %s16 = scalar_lea.sflag [#allocation3], 1
    %17 = vsyncpa %s16, 0
    loop: start=0, step=1, limit=4
    $region2: #{tpu_custom_call.1} parent=1 // loop_pre_header
      _
    $region3: #{tpu_custom_call.1} parent=1 // loop_header
      %s19 = sphi 0, %s23
      %p20 = scmp.ge.s32.totalorder %s19, 4
      %s29 = sphi 0, %s31
      %s32 = sphi 0, %s29
      %s33 = sphi 0, %s32
      %s49 = sphi 0, %s33
      %s55 = sphi 0, %s57
      %s58 = sphi 0, %s55
      %s59 = sphi 0, %s58
      %s75 = sphi 0, %s59
      %s79 = sphi 0, %s79
      %s81 = sphi 0, %s79
      %s82 = sphi 0, %s81
      %s96 = sphi 0, %s82
      %s100 = sphi 0, %s100
      %s102 = sphi 0, %s100
      %s103 = sphi 0, %s102
      %s117 = sphi 0, %s103
      %s121 = sphi 0, %s121
      %s123 = sphi 0, %s121
      %s124 = sphi 0, %s123
      %s138 = sphi 0, %s124
      %s142 = sphi 0, %s142
      %s144 = sphi 0, %s142
      %s145 = sphi 0, %s144
      %s159 = sphi 0, %s145
      %s163 = sphi 0, %s163
      %s165 = sphi 0, %s163
      %s166 = sphi 0, %s165
      %s180 = sphi 0, %s166
      %s184 = sphi 0, %s184
      %s186 = sphi 0, %s184
      %s187 = sphi 0, %s186
      %s201 = sphi 0, %s187
      %s205 = sphi 0, %s205
      %s207 = sphi 0, %s205
      %s208 = sphi 0, %s207
      %s222 = sphi 0, %s208
      %s226 = sphi 0, %s226
      %s228 = sphi 0, %s226
      %s229 = sphi 0, %s228
      %s243 = sphi 0, %s229
      %s249 = sphi 0, %s251
      %s252 = sphi 0, %s249
      %s253 = sphi 0, %s252
      %s269 = sphi 0, %s253
    $region4: #{tpu_custom_call.1} parent=1 // loop_header_branch
      %22 = sbr.rel (%p20) target = $region8
    $region5: #{tpu_custom_call.1} parent=1 // loop_body
      %s24 = ssub.s32 %s19, 1
      %s25 = ssub.s32 %s19, 2
      %s26 = sadd.s32 %s19, 1
      %s27 = ssub.s32 %s19, %s26
      %p28 = scmp.eq.s32.totalorder %s27, 0
      %s30 = sadd.s32 %s29, 1
      %s31 = scalar_select %p28, %s29, %s30
      %p34 = pneg %p28
      %p35 = scmp.eq.s32.totalorder %s19, 1
      %p36 = por %p34, %p35
      %p37 = scmp.ne.s32.totalorder %s29, %s32
      %p38 = scmp.eq.s32.totalorder %s19, 0
      %p39 = por %p37, %p38
      %p40 = scmp.ne.s32.totalorder %s29, %s32
      %p41 = scmp.eq.s32.totalorder %s24, 1
      %p42 = por %p40, %p41
      %p43 = scmp.ne.s32.totalorder %s32, %s33
      %p44 = scmp.eq.s32.totalorder %s24, 0
      %p45 = por %p43, %p44
      %p46 = scmp.ne.s32.totalorder %s32, %s33
      %p47 = scmp.eq.s32.totalorder %s25, 1
      %p48 = por %p46, %p47
      %p50 = scmp.ne.s32.totalorder %s33, %s49
      %p51 = scmp.eq.s32.totalorder %s25, 0
      %p52 = por %p50, %p51
      %s53 = ssub.s32 %s19, %s26
      %p54 = scmp.eq.s32.totalorder %s53, 0
      %s56 = sadd.s32 %s55, 1
      %s57 = scalar_select %p54, %s55, %s56
      %p60 = pneg %p54
      %p61 = scmp.eq.s32.totalorder %s19, 1
      %p62 = por %p60, %p61
      %p63 = scmp.ne.s32.totalorder %s55, %s58
      %p64 = scmp.eq.s32.totalorder %s19, 0
      %p65 = por %p63, %p64
      %p66 = scmp.ne.s32.totalorder %s55, %s58
      %p67 = scmp.eq.s32.totalorder %s24, 1
      %p68 = por %p66, %p67
      %p69 = scmp.ne.s32.totalorder %s58, %s59
      %p70 = scmp.eq.s32.totalorder %s24, 0
      %p71 = por %p69, %p70
      %p72 = scmp.ne.s32.totalorder %s58, %s59
      %p73 = scmp.eq.s32.totalorder %s25, 1
      %p74 = por %p72, %p73
      %p76 = scmp.ne.s32.totalorder %s59, %s75
      %p77 = scmp.eq.s32.totalorder %s25, 0
      %p78 = por %p76, %p77
      %s80 = sadd.s32 %s79, 1
      %p83 = scmp.eq.s32.totalorder %s19, 1
      %p84 = scmp.ne.s32.totalorder %s79, %s81
      %p85 = scmp.eq.s32.totalorder %s19, 0
      %p86 = por %p84, %p85
      %p87 = scmp.ne.s32.totalorder %s79, %s81
      %p88 = scmp.eq.s32.totalorder %s24, 1
      %p89 = por %p87, %p88
      %p90 = scmp.ne.s32.totalorder %s81, %s82
      %p91 = scmp.eq.s32.totalorder %s24, 0
      %p92 = por %p90, %p91
      %p93 = scmp.ne.s32.totalorder %s81, %s82
      %p94 = scmp.eq.s32.totalorder %s25, 1
      %p95 = por %p93, %p94
      %p97 = scmp.ne.s32.totalorder %s82, %s96
      %p98 = scmp.eq.s32.totalorder %s25, 0
      %p99 = por %p97, %p98
      %s101 = sadd.s32 %s100, 1
      %p104 = scmp.eq.s32.totalorder %s19, 1
      %p105 = scmp.ne.s32.totalorder %s100, %s102
      %p106 = scmp.eq.s32.totalorder %s19, 0
      %p107 = por %p105, %p106
      %p108 = scmp.ne.s32.totalorder %s100, %s102
      %p109 = scmp.eq.s32.totalorder %s24, 1
      %p110 = por %p108, %p109
      %p111 = scmp.ne.s32.totalorder %s102, %s103
      %p112 = scmp.eq.s32.totalorder %s24, 0
      %p113 = por %p111, %p112
      %p114 = scmp.ne.s32.totalorder %s102, %s103
      %p115 = scmp.eq.s32.totalorder %s25, 1
      %p116 = por %p114, %p115
      %p118 = scmp.ne.s32.totalorder %s103, %s117
      %p119 = scmp.eq.s32.totalorder %s25, 0
      %p120 = por %p118, %p119
      %s122 = sadd.s32 %s121, 1
      %p125 = scmp.eq.s32.totalorder %s19, 1
      %p126 = scmp.ne.s32.totalorder %s121, %s123
      %p127 = scmp.eq.s32.totalorder %s19, 0
      %p128 = por %p126, %p127
      %p129 = scmp.ne.s32.totalorder %s121, %s123
      %p130 = scmp.eq.s32.totalorder %s24, 1
      %p131 = por %p129, %p130
      %p132 = scmp.ne.s32.totalorder %s123, %s124
      %p133 = scmp.eq.s32.totalorder %s24, 0
      %p134 = por %p132, %p133
      %p135 = scmp.ne.s32.totalorder %s123, %s124
      %p136 = scmp.eq.s32.totalorder %s25, 1
      %p137 = por %p135, %p136
      %p139 = scmp.ne.s32.totalorder %s124, %s138
      %p140 = scmp.eq.s32.totalorder %s25, 0
      %p141 = por %p139, %p140
      %s143 = sadd.s32 %s142, 1
      %p146 = scmp.eq.s32.totalorder %s19, 1
      %p147 = scmp.ne.s32.totalorder %s142, %s144
      %p148 = scmp.eq.s32.totalorder %s19, 0
      %p149 = por %p147, %p148
      %p150 = scmp.ne.s32.totalorder %s142, %s144
      %p151 = scmp.eq.s32.totalorder %s24, 1
      %p152 = por %p150, %p151
      %p153 = scmp.ne.s32.totalorder %s144, %s145
      %p154 = scmp.eq.s32.totalorder %s24, 0
      %p155 = por %p153, %p154
      %p156 = scmp.ne.s32.totalorder %s144, %s145
      %p157 = scmp.eq.s32.totalorder %s25, 1
      %p158 = por %p156, %p157
      %p160 = scmp.ne.s32.totalorder %s145, %s159
      %p161 = scmp.eq.s32.totalorder %s25, 0
      %p162 = por %p160, %p161
      %s164 = sadd.s32 %s163, 1
      %p167 = scmp.eq.s32.totalorder %s19, 1
      %p168 = scmp.ne.s32.totalorder %s163, %s165
      %p169 = scmp.eq.s32.totalorder %s19, 0
      %p170 = por %p168, %p169
      %p171 = scmp.ne.s32.totalorder %s163, %s165
      %p172 = scmp.eq.s32.totalorder %s24, 1
      %p173 = por %p171, %p172
      %p174 = scmp.ne.s32.totalorder %s165, %s166
      %p175 = scmp.eq.s32.totalorder %s24, 0
      %p176 = por %p174, %p175
      %p177 = scmp.ne.s32.totalorder %s165, %s166
      %p178 = scmp.eq.s32.totalorder %s25, 1
      %p179 = por %p177, %p178
      %p181 = scmp.ne.s32.totalorder %s166, %s180
      %p182 = scmp.eq.s32.totalorder %s25, 0
      %p183 = por %p181, %p182
      %s185 = sadd.s32 %s184, 1
      %p188 = scmp.eq.s32.totalorder %s19, 1
      %p189 = scmp.ne.s32.totalorder %s184, %s186
      %p190 = scmp.eq.s32.totalorder %s19, 0
      %p191 = por %p189, %p190
      %p192 = scmp.ne.s32.totalorder %s184, %s186
      %p193 = scmp.eq.s32.totalorder %s24, 1
      %p194 = por %p192, %p193
      %p195 = scmp.ne.s32.totalorder %s186, %s187
      %p196 = scmp.eq.s32.totalorder %s24, 0
      %p197 = por %p195, %p196
      %p198 = scmp.ne.s32.totalorder %s186, %s187
      %p199 = scmp.eq.s32.totalorder %s25, 1
      %p200 = por %p198, %p199
      %p202 = scmp.ne.s32.totalorder %s187, %s201
      %p203 = scmp.eq.s32.totalorder %s25, 0
      %p204 = por %p202, %p203
      %s206 = sadd.s32 %s205, 1
      %p209 = scmp.eq.s32.totalorder %s19, 1
      %p210 = scmp.ne.s32.totalorder %s205, %s207
      %p211 = scmp.eq.s32.totalorder %s19, 0
      %p212 = por %p210, %p211
      %p213 = scmp.ne.s32.totalorder %s205, %s207
      %p214 = scmp.eq.s32.totalorder %s24, 1
      %p215 = por %p213, %p214
      %p216 = scmp.ne.s32.totalorder %s207, %s208
      %p217 = scmp.eq.s32.totalorder %s24, 0
      %p218 = por %p216, %p217
      %p219 = scmp.ne.s32.totalorder %s207, %s208
      %p220 = scmp.eq.s32.totalorder %s25, 1
      %p221 = por %p219, %p220
      %p223 = scmp.ne.s32.totalorder %s208, %s222
      %p224 = scmp.eq.s32.totalorder %s25, 0
      %p225 = por %p223, %p224
      %s227 = sadd.s32 %s226, 1
      %p230 = scmp.eq.s32.totalorder %s19, 1
      %p231 = scmp.ne.s32.totalorder %s226, %s228
      %p232 = scmp.eq.s32.totalorder %s19, 0
      %p233 = por %p231, %p232
      %p234 = scmp.ne.s32.totalorder %s226, %s228
      %p235 = scmp.eq.s32.totalorder %s24, 1
      %p236 = por %p234, %p235
      %p237 = scmp.ne.s32.totalorder %s228, %s229
      %p238 = scmp.eq.s32.totalorder %s24, 0
      %p239 = por %p237, %p238
      %p240 = scmp.ne.s32.totalorder %s228, %s229
      %p241 = scmp.eq.s32.totalorder %s25, 1
      %p242 = por %p240, %p241
      %p244 = scmp.ne.s32.totalorder %s229, %s243
      %p245 = scmp.eq.s32.totalorder %s25, 0
      %p246 = por %p244, %p245
      %s247 = ssub.s32 %s19, %s26
      %p248 = scmp.eq.s32.totalorder %s247, 0
      %s250 = sadd.s32 %s249, 1
      %s251 = scalar_select %p248, %s249, %s250
      %p254 = pneg %p248
      %p255 = scmp.eq.s32.totalorder %s19, 1
      %p256 = por %p254, %p255
      %p257 = scmp.ne.s32.totalorder %s249, %s252
      %p258 = scmp.eq.s32.totalorder %s19, 0
      %p259 = por %p257, %p258
      %p260 = scmp.ne.s32.totalorder %s249, %s252
      %p261 = scmp.eq.s32.totalorder %s24, 1
      %p262 = por %p260, %p261
      %p263 = scmp.ne.s32.totalorder %s252, %s253
      %p264 = scmp.eq.s32.totalorder %s24, 0
      %p265 = por %p263, %p264
      %p266 = scmp.ne.s32.totalorder %s252, %s253
      %p267 = scmp.eq.s32.totalorder %s25, 1
      %p268 = por %p266, %p267
      %p270 = scmp.ne.s32.totalorder %s253, %s269
      %p271 = scmp.eq.s32.totalorder %s25, 0
      %p272 = por %p270, %p271
      %p273 = scmp.le.s32.totalorder 1, %s19
      %p274 = scmp.lt.s32.totalorder %s19, 3
      %p275 = pnand %p273, %p274
      %p276 = pneg %p275
      // Predicated region
      $region9: #{tpu_custom_call.1} parent=5 // pred_check
        _
      $region10: #{tpu_custom_call.1} parent=5 // pred_check_branch
        %278 = sbr.rel (%p275) target = $region12
      $region11: #{tpu_custom_call.1} parent=5 // pred_region
        %s279 = ssub.s32 %s19, 1
        // Predicated region
        $region13: #{tpu_custom_call.1} parent=11 // pred_check
          %p280 = pneg %p92
        $region14: #{tpu_custom_call.1} parent=11 // pred_check_branch
          %282 = sbr.rel (%p280) target = $region16
        $region15: #{tpu_custom_call.1} parent=11 // pred_region
          _
        $region16: #{tpu_custom_call.1} parent=11 // pred_fallthru
          _
        // Predicated region
        $region17: #{tpu_custom_call.1} parent=11 // pred_check
          %p283 = pneg %p113
        $region18: #{tpu_custom_call.1} parent=11 // pred_check_branch
          %285 = sbr.rel (%p283) target = $region20
        $region19: #{tpu_custom_call.1} parent=11 // pred_region
          _
        $region20: #{tpu_custom_call.1} parent=11 // pred_fallthru
          _
        // Predicated region
        $region21: #{tpu_custom_call.1} parent=11 // pred_check
          %p286 = pneg %p134
        $region22: #{tpu_custom_call.1} parent=11 // pred_check_branch
          %288 = sbr.rel (%p286) target = $region24
        $region23: #{tpu_custom_call.1} parent=11 // pred_region
          _
        $region24: #{tpu_custom_call.1} parent=11 // pred_fallthru
          _
        // Predicated region
        $region25: #{tpu_custom_call.1} parent=11 // pred_check
          %p289 = pneg %p155
        $region26: #{tpu_custom_call.1} parent=11 // pred_check_branch
          %291 = sbr.rel (%p289) target = $region28
        $region27: #{tpu_custom_call.1} parent=11 // pred_region
          _
        $region28: #{tpu_custom_call.1} parent=11 // pred_fallthru
          _
        // Predicated region
        $region29: #{tpu_custom_call.1} parent=11 // pred_check
          %p292 = pneg %p176
        $region30: #{tpu_custom_call.1} parent=11 // pred_check_branch
          %294 = sbr.rel (%p292) target = $region32
        $region31: #{tpu_custom_call.1} parent=11 // pred_region
          _
        $region32: #{tpu_custom_call.1} parent=11 // pred_fallthru
          _
        // Predicated region
        $region33: #{tpu_custom_call.1} parent=11 // pred_check
          %p295 = pneg %p197
        $region34: #{tpu_custom_call.1} parent=11 // pred_check_branch
          %297 = sbr.rel (%p295) target = $region36
        $region35: #{tpu_custom_call.1} parent=11 // pred_region
          _
        $region36: #{tpu_custom_call.1} parent=11 // pred_fallthru
          _
        // Predicated region
        $region37: #{tpu_custom_call.1} parent=11 // pred_check
          %p298 = pneg %p218
        $region38: #{tpu_custom_call.1} parent=11 // pred_check_branch
          %300 = sbr.rel (%p298) target = $region40
        $region39: #{tpu_custom_call.1} parent=11 // pred_region
          _
        $region40: #{tpu_custom_call.1} parent=11 // pred_fallthru
          _
        // Predicated region
        $region41: #{tpu_custom_call.1} parent=11 // pred_check
          %p301 = pneg %p239
        $region42: #{tpu_custom_call.1} parent=11 // pred_check_branch
          %303 = sbr.rel (%p301) target = $region44
        $region43: #{tpu_custom_call.1} parent=11 // pred_region
          _
        $region44: #{tpu_custom_call.1} parent=11 // pred_fallthru
          _
      $region12: #{tpu_custom_call.1} parent=5 // pred_fallthru
        _
      %p304 = scmp.lt.s32.totalorder %s19, 2
      // Predicated region
      $region45: #{tpu_custom_call.1} parent=5 // pred_check
        %p305 = pneg %p304
      $region46: #{tpu_custom_call.1} parent=5 // pred_check_branch
        %307 = sbr.rel (%p305) target = $region48
      $region47: #{tpu_custom_call.1} parent=5 // pred_region
        // Predicated region
        $region49: #{tpu_custom_call.1} parent=47 // pred_check
          %p308 = pneg %p39
        $region50: #{tpu_custom_call.1} parent=47 // pred_check_branch
          %310 = sbr.rel (%p308) target = $region52
        $region51: #{tpu_custom_call.1} parent=47 // pred_region
          %s311 = smul.u32 2, %s19
          %p312 = scmp.lt.s32.totalorder %s311, 3
          %s313 = scalar_select %p312, %s311, 3
          %s314 = scalar_lea.vmem %s0, %s313
          %s315 = smul.u32 2, %s19
        $region52: #{tpu_custom_call.1} parent=47 // pred_fallthru
          _
        // Predicated region
        $region53: #{tpu_custom_call.1} parent=47 // pred_check
          %p316 = pneg %p65
        $region54: #{tpu_custom_call.1} parent=47 // pred_check_branch
          %318 = sbr.rel (%p316) target = $region56
        $region55: #{tpu_custom_call.1} parent=47 // pred_region
          %s319 = smul.u32 2, %s19
          %p320 = scmp.lt.s32.totalorder %s319, 3
          %s321 = scalar_select %p320, %s319, 3
          %s322 = scalar_lea.vmem %s1, %s321
          %s323 = smul.u32 2, %s19
        $region56: #{tpu_custom_call.1} parent=47 // pred_fallthru
          _
      $region48: #{tpu_custom_call.1} parent=5 // pred_fallthru
        _
      %p324 = scmp.le.s32.totalorder 1, %s19
      %p325 = scmp.lt.s32.totalorder %s19, 3
      %p326 = pnand %p324, %p325
      %p327 = pneg %p326
      // Predicated region
      $region57: #{tpu_custom_call.1} parent=5 // pred_check
        _
      $region58: #{tpu_custom_call.1} parent=5 // pred_check_branch
        %329 = sbr.rel (%p326) target = $region60
      $region59: #{tpu_custom_call.1} parent=5 // pred_region
        %s330 = ssub.s32 %s19, 1
        %s331 = smul.u32 2, %s24
        %p332 = scmp.lt.s32.totalorder %s331, 3
        %s333 = scalar_select %p332, %s331, 3
        %s334 = scalar_lea.vmem %s0, %s333
        %p335 = pneg %p45
        %p336 = pneg %p42
        %s337 = smul.u32 2, %s24
        %p338 = scmp.lt.s32.totalorder %s337, 3
        %s339 = scalar_select %p338, %s337, 3
        %s340 = scalar_lea.vmem %s1, %s339
        %p341 = pneg %p71
        %p342 = pneg %p68
        %p343 = pneg %p92
        %p344 = pneg %p89
        %p345 = pneg %p113
        %p346 = pneg %p110
        %p347 = pneg %p134
        %p348 = pneg %p131
        %p349 = pneg %p155
        %p350 = pneg %p152
        %p351 = pneg %p176
        %p352 = pneg %p173
        %p353 = pneg %p197
        %p354 = pneg %p194
        %p355 = pneg %p218
        %p356 = pneg %p215
        %p357 = pneg %p239
        %p358 = pneg %p236
        %p359 = pneg %p265
        %p360 = pneg %p262
        %s361 = sand.u32 %s252, 1
        %s362 = scalar_lea.sflag [#allocation3], %s361
        %s363 = sand.u32 %s252, 1
        %s364 = smul.addr %s363, 4
        %s365 = scalar_lea.vmem [#allocation2], %s364
        %s366 = smul.u32 2, %s24
        %p367 = scmp.lt.s32.totalorder %s366, 3
        %s368 = scalar_select %p367, %s366, 3
        %s369 = scalar_lea.vmem %s0, %s368
        %s370 = smul.u32 2, %s24
        %s371 = smul.u32 2, %s24
        %p372 = scmp.lt.s32.totalorder %s371, 3
        %s373 = scalar_select %p372, %s371, 3
        %s374 = scalar_lea.vmem %s1, %s373
        %s375 = smul.u32 2, %s24
        %s376 = smul.u32 2, %s24
        %v377 = vld [vmem:[%s2] sm:$0xff]
        %v378 = vld [vmem:[%s2 + $0x8] sm:$0xff]
        %v379 = vld [vmem:[%s2 + $0x10] sm:$0xff]
        %v380 = vld [vmem:[%s2 + $0x18] sm:$0xff]
        %v381 = vld [vmem:[%s3] sm:$0xff]
        %v382 = vld [vmem:[%s3 + $0x8] sm:$0xff]
        %v383 = vld [vmem:[%s3 + $0x10] sm:$0xff]
        %v384 = vld [vmem:[%s3 + $0x18] sm:$0xff]
        %v385 = vld [vmem:[%s4] sm:$0xff]
        %v386 = vld [vmem:[%s4 + $0x8] sm:$0xff]
        %v387 = vld [vmem:[%s4 + $0x10] sm:$0xff]
        %v388 = vld [vmem:[%s4 + $0x18] sm:$0xff]
        %v389 = vld [vmem:[%s6] sm:$0xff]
        %v390 = vld [vmem:[%s6 + $0x8] sm:$0xff]
        %v391 = vld [vmem:[%s6 + $0x10] sm:$0xff]
        %v392 = vld [vmem:[%s6 + $0x18] sm:$0xff]
        %v393 = vld [vmem:[%s8] sm:$0x3]
        %v394 = vld [vmem:[%s5] sm:$0xff]
        %v395 = vld [vmem:[%s5 + $0x8] sm:$0xff]
        %v396 = vld [vmem:[%s5 + $0x10] sm:$0xff]
        %v397 = vld [vmem:[%s5 + $0x18] sm:$0xff]
        %v398 = vld [vmem:[%s7] sm:$0xff]
        %v399 = vld [vmem:[%s7 + $0x8] sm:$0xff]
        %v400 = vld [vmem:[%s7 + $0x10] sm:$0xff]
        %v401 = vld [vmem:[%s7 + $0x18] sm:$0xff]
        %v402 = vld [vmem:[%s9] sm:$0x3]
        %v403 = vld [vmem:[%s369] sm:$0x3]
        %v404 = vld [vmem:[%s374] sm:$0x3]
        %406 = vset.pattern.permute.xlu0 0
        %407 = vperm.xlu0 %406, %v377
        %v408 = vpop.permute.xlu0 %407
        %411 = vset.pattern.permute.xlu0 0
        %412 = vperm.xlu0 %411, %v378
        %v413 = vpop.permute.xlu0 %412
        %416 = vset.pattern.permute.xlu0 0
        %417 = vperm.xlu0 %416, %v379
        %v418 = vpop.permute.xlu0 %417
        %421 = vset.pattern.permute.xlu0 0
        %422 = vperm.xlu0 %421, %v380
        %v423 = vpop.permute.xlu0 %422
        %v426 = vlaneseq
        %v427 = vshrl.u32 %v426, 7
        %v428 = vsub.s32 0, %v427
        %v429 = vrot.slane %v403, %v428
        %v430 = vlaneseq
        %v431 = vshrl.u32 %v430, 7
        %v432 = vsub.s32 1, %v431
        %v433 = vrot.slane %v403, %v432
        %v436 = vmul.f32 %v408, %v429
        %v437 = vmul.f32 %v408, %v433
        %v438 = vmul.f32 %v413, %v429
        %v439 = vmul.f32 %v413, %v433
        %v440 = vmul.f32 %v418, %v429
        %v441 = vmul.f32 %v418, %v433
        %v442 = vmul.f32 %v423, %v429
        %v443 = vmul.f32 %v423, %v433
        %445 = vset.pattern.permute.xlu0 0
        %446 = vperm.xlu0 %445, %v381
        %v447 = vpop.permute.xlu0 %446
        %450 = vset.pattern.permute.xlu0 0
        %451 = vperm.xlu0 %450, %v382
        %v452 = vpop.permute.xlu0 %451
        %455 = vset.pattern.permute.xlu0 0
        %456 = vperm.xlu0 %455, %v383
        %v457 = vpop.permute.xlu0 %456
        %460 = vset.pattern.permute.xlu0 0
        %461 = vperm.xlu0 %460, %v384
        %v462 = vpop.permute.xlu0 %461
        %v464 = vadd.f32 %v447, %v436
        %v465 = vadd.f32 %v447, %v437
        %v466 = vadd.f32 %v452, %v438
        %v467 = vadd.f32 %v452, %v439
        %v468 = vadd.f32 %v457, %v440
        %v469 = vadd.f32 %v457, %v441
        %v470 = vadd.f32 %v462, %v442
        %v471 = vadd.f32 %v462, %v443
        %472 = vset.pattern.permute.xlu0 1
        %473 = vperm.xlu0 %472, %v377
        %v474 = vpop.permute.xlu0 %473
        %476 = vset.pattern.permute.xlu0 1
        %477 = vperm.xlu0 %476, %v378
        %v478 = vpop.permute.xlu0 %477
        %480 = vset.pattern.permute.xlu0 1
        %481 = vperm.xlu0 %480, %v379
        %v482 = vpop.permute.xlu0 %481
        %484 = vset.pattern.permute.xlu0 1
        %485 = vperm.xlu0 %484, %v380
        %v486 = vpop.permute.xlu0 %485
        %v489 = vlaneseq
        %v490 = vshrl.u32 %v489, 7
        %v491 = vsub.s32 0, %v490
        %v492 = vrot.slane %v404, %v491
        %v493 = vlaneseq
        %v494 = vshrl.u32 %v493, 7
        %v495 = vsub.s32 1, %v494
        %v496 = vrot.slane %v404, %v495
        %v499 = vmul.f32 %v474, %v492
        %v500 = vmul.f32 %v474, %v496
        %v501 = vmul.f32 %v478, %v492
        %v502 = vmul.f32 %v478, %v496
        %v503 = vmul.f32 %v482, %v492
        %v504 = vmul.f32 %v482, %v496
        %v505 = vmul.f32 %v486, %v492
        %v506 = vmul.f32 %v486, %v496
        %v507 = vadd.f32 %v464, %v499
        %v508 = vadd.f32 %v465, %v500
        %v509 = vadd.f32 %v466, %v501
        %v510 = vadd.f32 %v467, %v502
        %v511 = vadd.f32 %v468, %v503
        %v512 = vadd.f32 %v469, %v504
        %v513 = vadd.f32 %v470, %v505
        %v514 = vadd.f32 %v471, %v506
        %v515 = vtanh.pop %v507
        %v516 = vtanh.pop %v508
        %v517 = vtanh.pop %v509
        %v518 = vtanh.pop %v510
        %v519 = vtanh.pop %v511
        %v520 = vtanh.pop %v512
        %v521 = vtanh.pop %v513
        %v522 = vtanh.pop %v514
        %524 = vset.pattern.permute.xlu0 0
        %525 = vperm.xlu0 %524, %v394
        %v526 = vpop.permute.xlu0 %525
        %529 = vset.pattern.permute.xlu0 0
        %530 = vperm.xlu0 %529, %v395
        %v531 = vpop.permute.xlu0 %530
        %534 = vset.pattern.permute.xlu0 0
        %535 = vperm.xlu0 %534, %v396
        %v536 = vpop.permute.xlu0 %535
        %539 = vset.pattern.permute.xlu0 0
        %540 = vperm.xlu0 %539, %v397
        %v541 = vpop.permute.xlu0 %540
        %vm543 = vcmask 261120
        %v545 = vsel %vm543, %v385, 0
        %v548 = vsel %vm543, %v386, 0
        %v551 = vsel %vm543, %v387, 0
        %v554 = vsel %vm543, %v388, 0
        %556 = vmatprep.subr.mxu0 %v516
        %557 = vmatpush1.msra.mxu0 %v515
        %558 = vmatprep.subr.mxu0 %v518
        %559 = vmatpush1.msra.mxu0 %v517
        %560 = vmatprep.subr.mxu0 %v520
        %561 = vmatpush1.msra.mxu0 %v519
        %562 = vmatprep.subr.mxu0 %v522
        %563 = vmatpush1.msra.mxu0 %v521
        %564 = vmatprep.subr.mxu0 0.0
        %565 = vmatpush1.msra.mxu0 0.0
        %566 = vmatprep.subr.mxu0 0.0
        %567 = vmatpush1.msra.mxu0 0.0
        %568 = vmatprep.subr.mxu0 0.0
        %569 = vmatpush1.msra.mxu0 0.0
        %570 = vmatprep.subr.mxu0 0.0
        %571 = vmatpush1.msra.mxu0 0.0
        %572 = vmatprep.subr.mxu0 0.0
        %573 = vmatpush1.msra.mxu0 0.0
        %574 = vmatprep.subr.mxu0 0.0
        %575 = vmatpush1.msra.mxu0 0.0
        %576 = vmatprep.subr.mxu0 0.0
        %577 = vmatpush1.msra.mxu0 0.0
        %578 = vmatprep.subr.mxu0 0.0
        %579 = vmatpush1.msra.mxu0 0.0
        %580 = vmatprep.subr.mxu0 0.0
        %581 = vmatpush1.msra.mxu0 0.0
        %582 = vmatprep.subr.mxu0 0.0
        %583 = vmatpush1.msra.mxu0 0.0
        %584 = vmatprep.subr.mxu0 0.0
        %585 = vmatpush1.msra.mxu0 0.0
        %586 = vmatprep.subr.mxu0 0.0
        %587 = vmatpush1.msra.mxu0 0.0
        %588 = vmatprep.subr.mxu0 0.0
        %589 = vmatpush1.msra.mxu0 0.0
        %590 = vmatprep.subr.mxu0 0.0
        %591 = vmatpush1.msra.mxu0 0.0
        %592 = vmatprep.subr.mxu0 0.0
        %593 = vmatpush1.msra.mxu0 0.0
        %594 = vmatprep.subr.mxu0 0.0
        %595 = vmatpush1.msra.mxu0 0.0
        %596 = vmatprep.subr.mxu0 0.0
        %597 = vmatpush1.msra.mxu0 0.0
        %598 = vmatprep.subr.mxu0 0.0
        %599 = vmatpush1.msra.mxu0 0.0
        %600 = vmatprep.subr.mxu0 0.0
        %601 = vmatpush1.msra.mxu0 0.0
        %602 = vmatprep.subr.mxu0 0.0
        %603 = vmatpush1.msra.mxu0 0.0
        %604 = vmatprep.subr.mxu0 0.0
        %605 = vmatpush1.msra.mxu0 0.0
        %606 = vmatprep.subr.mxu0 0.0
        %607 = vmatpush1.msra.mxu0 0.0
        %608 = vmatprep.subr.mxu0 0.0
        %609 = vmatpush1.msra.mxu0 0.0
        %610 = vmatprep.subr.mxu0 0.0
        %611 = vmatpush1.msra.mxu0 0.0
        %612 = vmatprep.subr.mxu0 0.0
        %613 = vmatpush1.msra.mxu0 0.0
        %614 = vmatprep.subr.mxu0 0.0
        %615 = vmatpush1.msra.mxu0 0.0
        %616 = vmatprep.subr.mxu0 0.0
        %617 = vmatpush1.msra.mxu0 0.0
        %618 = vmatprep.subr.mxu0 0.0
        %619 = vmatpush1.msra.mxu0 0.0
        %620 = vmatprep.mubr.f32.mxu0 0.0
        %621 = vmatmul.mubr.f32.gmra.mrb[0].mxu0 %v545
        %v622 = vpop.f32.mrb[0].mxu0
        %v623 = vadd.f32 %v526, %v622
        %v624 = vpop.f32.mrb[0].mxu0
        %v625 = vadd.f32 %v526, %v624
        %626 = vmatprep.mubr.f32.mxu0 0.0
        %627 = vmatmul.mubr.f32.gmra.mrb[0].mxu0 %v548
        %v628 = vpop.f32.mrb[0].mxu0
        %v629 = vadd.f32 %v531, %v628
        %v630 = vpop.f32.mrb[0].mxu0
        %v631 = vadd.f32 %v531, %v630
        %632 = vmatprep.mubr.f32.mxu0 0.0
        %633 = vmatmul.mubr.f32.gmra.mrb[0].mxu0 %v551
        %v634 = vpop.f32.mrb[0].mxu0
        %v635 = vadd.f32 %v536, %v634
        %v636 = vpop.f32.mrb[0].mxu0
        %v637 = vadd.f32 %v536, %v636
        %638 = vmatprep.mubr.f32.mxu0 0.0
        %639 = vmatmul.mubr.f32.gmra.mrb[0].mxu0 %v554
        %v640 = vpop.f32.mrb[0].mxu0
        %v641 = vadd.f32 %v541, %v640
        %v642 = vpop.f32.mrb[0].mxu0
        %v643 = vadd.f32 %v541, %v642
        %644 = vdwg.mxu0
        %v645 = vtanh.pop %v623
        %v646 = vtanh.pop %v625
        %v647 = vtanh.pop %v629
        %v648 = vtanh.pop %v631
        %v649 = vtanh.pop %v635
        %v650 = vtanh.pop %v637
        %v651 = vtanh.pop %v641
        %v652 = vtanh.pop %v643
        %654 = vset.pattern.permute.xlu0 0
        %655 = vperm.xlu0 %654, %v398
        %v656 = vpop.permute.xlu0 %655
        %659 = vset.pattern.permute.xlu0 0
        %660 = vperm.xlu0 %659, %v399
        %v661 = vpop.permute.xlu0 %660
        %664 = vset.pattern.permute.xlu0 0
        %665 = vperm.xlu0 %664, %v400
        %v666 = vpop.permute.xlu0 %665
        %669 = vset.pattern.permute.xlu0 0
        %670 = vperm.xlu0 %669, %v401
        %v671 = vpop.permute.xlu0 %670
        %v674 = vsel %vm543, %v389, 0
        %v677 = vsel %vm543, %v390, 0
        %v680 = vsel %vm543, %v391, 0
        %v683 = vsel %vm543, %v392, 0
        %685 = vmatprep.subr.mxu0 %v646
        %686 = vmatpush1.msra.mxu0 %v645
        %687 = vmatprep.subr.mxu0 %v648
        %688 = vmatpush1.msra.mxu0 %v647
        %689 = vmatprep.subr.mxu0 %v650
        %690 = vmatpush1.msra.mxu0 %v649
        %691 = vmatprep.subr.mxu0 %v652
        %692 = vmatpush1.msra.mxu0 %v651
        %693 = vmatprep.subr.mxu0 0.0
        %694 = vmatpush1.msra.mxu0 0.0
        %695 = vmatprep.subr.mxu0 0.0
        %696 = vmatpush1.msra.mxu0 0.0
        %697 = vmatprep.subr.mxu0 0.0
        %698 = vmatpush1.msra.mxu0 0.0
        %699 = vmatprep.subr.mxu0 0.0
        %700 = vmatpush1.msra.mxu0 0.0
        %701 = vmatprep.subr.mxu0 0.0
        %702 = vmatpush1.msra.mxu0 0.0
        %703 = vmatprep.subr.mxu0 0.0
        %704 = vmatpush1.msra.mxu0 0.0
        %705 = vmatprep.subr.mxu0 0.0
        %706 = vmatpush1.msra.mxu0 0.0
        %707 = vmatprep.subr.mxu0 0.0
        %708 = vmatpush1.msra.mxu0 0.0
        %709 = vmatprep.subr.mxu0 0.0
        %710 = vmatpush1.msra.mxu0 0.0
        %711 = vmatprep.subr.mxu0 0.0
        %712 = vmatpush1.msra.mxu0 0.0
        %713 = vmatprep.subr.mxu0 0.0
        %714 = vmatpush1.msra.mxu0 0.0
        %715 = vmatprep.subr.mxu0 0.0
        %716 = vmatpush1.msra.mxu0 0.0
        %717 = vmatprep.subr.mxu0 0.0
        %718 = vmatpush1.msra.mxu0 0.0
        %719 = vmatprep.subr.mxu0 0.0
        %720 = vmatpush1.msra.mxu0 0.0
        %721 = vmatprep.subr.mxu0 0.0
        %722 = vmatpush1.msra.mxu0 0.0
        %723 = vmatprep.subr.mxu0 0.0
        %724 = vmatpush1.msra.mxu0 0.0
        %725 = vmatprep.subr.mxu0 0.0
        %726 = vmatpush1.msra.mxu0 0.0
        %727 = vmatprep.subr.mxu0 0.0
        %728 = vmatpush1.msra.mxu0 0.0
        %729 = vmatprep.subr.mxu0 0.0
        %730 = vmatpush1.msra.mxu0 0.0
        %731 = vmatprep.subr.mxu0 0.0
        %732 = vmatpush1.msra.mxu0 0.0
        %733 = vmatprep.subr.mxu0 0.0
        %734 = vmatpush1.msra.mxu0 0.0
        %735 = vmatprep.subr.mxu0 0.0
        %736 = vmatpush1.msra.mxu0 0.0
        %737 = vmatprep.subr.mxu0 0.0
        %738 = vmatpush1.msra.mxu0 0.0
        %739 = vmatprep.subr.mxu0 0.0
        %740 = vmatpush1.msra.mxu0 0.0
        %741 = vmatprep.subr.mxu0 0.0
        %742 = vmatpush1.msra.mxu0 0.0
        %743 = vmatprep.subr.mxu0 0.0
        %744 = vmatpush1.msra.mxu0 0.0
        %745 = vmatprep.subr.mxu0 0.0
        %746 = vmatpush1.msra.mxu0 0.0
        %747 = vmatprep.subr.mxu0 0.0
        %748 = vmatpush1.msra.mxu0 0.0
        %749 = vmatprep.mubr.f32.mxu0 0.0
        %750 = vmatmul.mubr.f32.gmra.mrb[0].mxu0 %v674
        %v751 = vpop.f32.mrb[0].mxu0
        %v752 = vadd.f32 %v656, %v751
        %v753 = vpop.f32.mrb[0].mxu0
        %v754 = vadd.f32 %v656, %v753
        %755 = vmatprep.mubr.f32.mxu0 0.0
        %756 = vmatmul.mubr.f32.gmra.mrb[0].mxu0 %v677
        %v757 = vpop.f32.mrb[0].mxu0
        %v758 = vadd.f32 %v661, %v757
        %v759 = vpop.f32.mrb[0].mxu0
        %v760 = vadd.f32 %v661, %v759
        %761 = vmatprep.mubr.f32.mxu0 0.0
        %762 = vmatmul.mubr.f32.gmra.mrb[0].mxu0 %v680
        %v763 = vpop.f32.mrb[0].mxu0
        %v764 = vadd.f32 %v666, %v763
        %v765 = vpop.f32.mrb[0].mxu0
        %v766 = vadd.f32 %v666, %v765
        %767 = vmatprep.mubr.f32.mxu0 0.0
        %768 = vmatmul.mubr.f32.gmra.mrb[0].mxu0 %v683
        %v769 = vpop.f32.mrb[0].mxu0
        %v770 = vadd.f32 %v671, %v769
        %v771 = vpop.f32.mrb[0].mxu0
        %v772 = vadd.f32 %v671, %v771
        %773 = vdwg.mxu0
        %v774 = vtanh.pop %v752
        %v775 = vtanh.pop %v754
        %v776 = vtanh.pop %v758
        %v777 = vtanh.pop %v760
        %v778 = vtanh.pop %v764
        %v779 = vtanh.pop %v766
        %v780 = vtanh.pop %v770
        %v781 = vtanh.pop %v772
        %783 = vset.pattern.permute.xlu0 0
        %784 = vperm.xlu0 %783, %v402
        %v785 = vpop.permute.xlu0 %784
        %v788 = vsel %vm543, %v393, 0
        %790 = vmatprep.subr.mxu0 %v775
        %791 = vmatpush1.msra.mxu0 %v774
        %792 = vmatprep.subr.mxu0 %v777
        %793 = vmatpush1.msra.mxu0 %v776
        %794 = vmatprep.subr.mxu0 %v779
        %795 = vmatpush1.msra.mxu0 %v778
        %796 = vmatprep.subr.mxu0 %v781
        %797 = vmatpush1.msra.mxu0 %v780
        %798 = vmatprep.subr.mxu0 0.0
        %799 = vmatpush1.msra.mxu0 0.0
        %800 = vmatprep.subr.mxu0 0.0
        %801 = vmatpush1.msra.mxu0 0.0
        %802 = vmatprep.subr.mxu0 0.0
        %803 = vmatpush1.msra.mxu0 0.0
        %804 = vmatprep.subr.mxu0 0.0
        %805 = vmatpush1.msra.mxu0 0.0
        %806 = vmatprep.subr.mxu0 0.0
        %807 = vmatpush1.msra.mxu0 0.0
        %808 = vmatprep.subr.mxu0 0.0
        %809 = vmatpush1.msra.mxu0 0.0
        %810 = vmatprep.subr.mxu0 0.0
        %811 = vmatpush1.msra.mxu0 0.0
        %812 = vmatprep.subr.mxu0 0.0
        %813 = vmatpush1.msra.mxu0 0.0
        %814 = vmatprep.subr.mxu0 0.0
        %815 = vmatpush1.msra.mxu0 0.0
        %816 = vmatprep.subr.mxu0 0.0
        %817 = vmatpush1.msra.mxu0 0.0
        %818 = vmatprep.subr.mxu0 0.0
        %819 = vmatpush1.msra.mxu0 0.0
        %820 = vmatprep.subr.mxu0 0.0
        %821 = vmatpush1.msra.mxu0 0.0
        %822 = vmatprep.subr.mxu0 0.0
        %823 = vmatpush1.msra.mxu0 0.0
        %824 = vmatprep.subr.mxu0 0.0
        %825 = vmatpush1.msra.mxu0 0.0
        %826 = vmatprep.subr.mxu0 0.0
        %827 = vmatpush1.msra.mxu0 0.0
        %828 = vmatprep.subr.mxu0 0.0
        %829 = vmatpush1.msra.mxu0 0.0
        %830 = vmatprep.subr.mxu0 0.0
        %831 = vmatpush1.msra.mxu0 0.0
        %832 = vmatprep.subr.mxu0 0.0
        %833 = vmatpush1.msra.mxu0 0.0
        %834 = vmatprep.subr.mxu0 0.0
        %835 = vmatpush1.msra.mxu0 0.0
        %836 = vmatprep.subr.mxu0 0.0
        %837 = vmatpush1.msra.mxu0 0.0
        %838 = vmatprep.subr.mxu0 0.0
        %839 = vmatpush1.msra.mxu0 0.0
        %840 = vmatprep.subr.mxu0 0.0
        %841 = vmatpush1.msra.mxu0 0.0
        %842 = vmatprep.subr.mxu0 0.0
        %843 = vmatpush1.msra.mxu0 0.0
        %844 = vmatprep.subr.mxu0 0.0
        %845 = vmatpush1.msra.mxu0 0.0
        %846 = vmatprep.subr.mxu0 0.0
        %847 = vmatpush1.msra.mxu0 0.0
        %848 = vmatprep.subr.mxu0 0.0
        %849 = vmatpush1.msra.mxu0 0.0
        %850 = vmatprep.subr.mxu0 0.0
        %851 = vmatpush1.msra.mxu0 0.0
        %852 = vmatprep.subr.mxu0 0.0
        %853 = vmatpush1.msra.mxu0 0.0
        %854 = vmatprep.mubr.f32.mxu0 0.0
        %855 = vmatmul.mubr.f32.gmra.mrb[0].mxu0 %v788
        %v856 = vpop.f32.mrb[0].mxu0
        %v857 = vadd.f32 %v785, %v856
        %v858 = vpop.f32.mrb[0].mxu0
        %v859 = vadd.f32 %v785, %v858
        %860 = vdwg.mxu0
        %v863 = vcombine.low %v857, %v859
        %v865 = vunpack.c.l.s4 1983009808
        %v866 = vunpack.c.0.s8 %v865
        %v867 = vlaneseq
        %v868 = vshrl.u32 %v867, 7
        %v869 = vsub.s32 %v866, %v868
        %v870 = vrot.slane %v863, %v869
        %872 = vst [vmem:[%s365] sm:$0xf] %v870
        %s873 = sand.u32 %s252, 1
        %s874 = scalar_lea.sflag [#allocation3], %s873
        %s875 = sand.u32 %s252, 1
        %s876 = smul.addr %s875, 4
        %s877 = scalar_lea.vmem [#allocation2], %s876
        // Predicated region
        $region61: #{tpu_custom_call.1} parent=59 // pred_check
          %p878 = pneg %p262
        $region62: #{tpu_custom_call.1} parent=59 // pred_check_branch
          %880 = sbr.rel (%p878) target = $region64
        $region63: #{tpu_custom_call.1} parent=59 // pred_region
          %s881 = smul.u32 2, %s24
          %s883 = ssub.s32 64, 64
          %884 = vsyncadd %s874, %s883
          %s885 = smul.addr %s881, 32
          %s886 = scalar_lea.hbm %s10, %s885
          %s888 = sshll.u32 %s877, 4
          %s889 = int_to_ptr.vmem [resolvable:$true] %s888
          %891 = dma.vmem_to_hbm [thread:$0]  %s889, 64, %s886, %s874
        $region64: #{tpu_custom_call.1} parent=59 // pred_fallthru
          _
      $region60: #{tpu_custom_call.1} parent=5 // pred_fallthru
        _
      %p892 = scmp.le.s32.totalorder 2, %s19
      // Predicated region
      $region65: #{tpu_custom_call.1} parent=5 // pred_check
        %p893 = pneg %p892
      $region66: #{tpu_custom_call.1} parent=5 // pred_check_branch
        %895 = sbr.rel (%p893) target = $region68
      $region67: #{tpu_custom_call.1} parent=5 // pred_region
        %s896 = ssub.s32 %s19, 2
        // Predicated region
        $region69: #{tpu_custom_call.1} parent=67 // pred_check
          %p897 = pneg %p268
        $region70: #{tpu_custom_call.1} parent=67 // pred_check_branch
          %899 = sbr.rel (%p897) target = $region72
        $region71: #{tpu_custom_call.1} parent=67 // pred_region
          %s900 = sand.u32 %s253, 1
          %s901 = scalar_lea.sflag [#allocation3], %s900
          %s902 = sand.u32 %s253, 1
          %s903 = smul.addr %s902, 4
          %s904 = scalar_lea.vmem [#allocation2], %s903
          %905 = dma.done %s901, 64
        $region72: #{tpu_custom_call.1} parent=67 // pred_fallthru
          _
      $region68: #{tpu_custom_call.1} parent=5 // pred_fallthru
        _
    $region6: #{tpu_custom_call.1} parent=1 // loop_footer
      %s23 = sadd.s32 1, %s19
    $region7: #{tpu_custom_call.1} parent=1 // loop_footer_branch
      %18 = sbr.rel target = $region3
    $region8: #{tpu_custom_call.1} parent=1 // loop_exit
      _
    %906 = vsyncpa [#allocation3], 1
    %s907 = scalar_lea.sflag [#allocation3], 1
    %908 = vsyncpa %s907, 1

</llo_original>
